<compile_context>
chip_gen: v6e
topology: v6e:2x2x1
jax: 0.10.0
libtpu: 0.0.40
codegen_flags: <defaults>
</compile_context>

<pallas_src>
import functools

import jax
import jax.numpy as jnp
from jax.experimental import pallas as pl
from jax.experimental.pallas import tpu as pltpu


def _partial_sums_kernel(zi_ref, zp_ref, out_ref, *, inv_temperature, batch_size):
    """Per batch-tile partial reductions.

    Writes a (1, 1, 128) lane-dense vector:
      lane 0: sum over valid rows of exp(scores)
      lane 1: sum over valid rows of scores
      lane 2: count of rows whose exp(scores) is zero or non-finite
              (those rows make the torch loss NaN via the diagonal -log(x/x) term)
    """
    tb = zi_ref.shape[0]
    zi = zi_ref[...].astype(jnp.float32)
    zp = zp_ref[...].astype(jnp.float32)

    # Row-wise dot product ('bi,bi->b') scaled by 1/T.  VPU multiply + XLU lane
    # reduce; deliberately NOT routed through the MXU (kernel is HBM-bound).
    scores = jnp.sum(zi * zp, axis=-1, keepdims=True) * inv_temperature   # (tb, 1)

    # Lane-dense epilogue: relayout the per-row column so exp / masking / sums touch
    # 128 useful lanes per vreg instead of 1.  Falls back to the (tb, 1) column for
    # small or unaligned tiles where the epilogue cost is negligible.
    if tb % 128 == 0:
        scores = scores.reshape(tb // 128, 128)
    rows, cols = scores.shape

    exp_pos = jnp.exp(scores)

    # Mask rows of the (possibly partial) last tile.  Row-major flattened index of
    # the (rows, cols) layout equals the original row index within the tile.
    row_ids = (pl.program_id(0) * tb
               + jax.lax.broadcasted_iota(jnp.int32, (rows, cols), 0) * cols
               + jax.lax.broadcasted_iota(jnp.int32, (rows, cols), 1))
    valid = row_ids < batch_size

    # NOTE: keep these as where/select (not multiply-masking) so NaN/Inf garbage in
    # padded rows of the last tile cannot propagate into the sums.
    zero = jnp.zeros_like(scores)
    sum_exp = jnp.sum(jnp.where(valid, exp_pos, zero))
    sum_scores = jnp.sum(jnp.where(valid, scores, zero))
    bad = jnp.logical_or(exp_pos == 0.0, jnp.logical_not(jnp.isfinite(exp_pos)))
    bad_count = jnp.sum(jnp.where(jnp.logical_and(valid, bad), 1.0, 0.0))

    lane = jax.lax.broadcasted_iota(jnp.int32, (1, 1, 128), 2)
    out_ref[...] = jnp.where(lane == 0, sum_exp,
                   jnp.where(lane == 1, sum_scores,
                   jnp.where(lane == 2, bad_count, 0.0)))


def _vmem_limit_bytes():
    """Scoped-VMEM limit to request from Mosaic.

    ~3/4 of physical VMEM, capped at 60 MiB so the request stays safe even on a v7x
    TensorCore (64 MiB physical); v5e/v6e have 128 MiB physical so 60 MiB is still
    ~2x the 32 MiB scoped default.  Conservative 64 MiB assumption if the query fails.
    """
    cap = 64 * 1024 * 1024
    try:
        info = pltpu.get_tpu_info()
        cap = int(getattr(info, "vmem_capacity_bytes", cap) or cap)
    except Exception:
        pass
    return max(32 * 1024 * 1024, min(cap * 3 // 4, 60 * 1024 * 1024))


def _pick_block_rows(batch, feat, itemsize, vmem_limit):
    """Largest batch tile whose VMEM working set fits under `vmem_limit`.

    Working set per tile row:
      * 2 inputs x 2 pipeline buffers of the input dtype          (4 * feat * itemsize)
      * in-kernel f32 intermediates: upcast copies of both inputs (only when the
        inputs are sub-32-bit) plus the elementwise product        (n_f32 * feat * 4)
    """
    n_f32_tmp = 1 if itemsize == 4 else 3
    per_row = 4 * feat * itemsize + n_f32_tmp * feat * 4
    budget = vmem_limit - max(4 * 1024 * 1024, vmem_limit // 8)   # headroom: out bufs,
    budget = max(budget, 2 * 1024 * 1024)                         # internal scratch, ...

    tb = budget // max(per_row, 1)
    if tb >= 128:
        tb = (tb // 128) * 128          # lane-dense epilogue + (8,128)/(16,128) tiling
    else:
        tb = max(8, (tb // 8) * 8)      # huge-D fallback: sublane-aligned only

    # v7x megacore: when the batch is large enough, cap the tile so the "parallel"
    # grid axis has >= 4 tiles and both TensorCores keep streaming.
    if batch >= 4 * 128:
        quarter = (((batch + 3) // 4) // 128) * 128
        if quarter >= 128:
            tb = min(tb, quarter)
    return max(tb, 8)


def global_ss_contrastive_loss(z_i, z_i_prime, temperature, *, block_rows=None,
                               cast_inputs_to_bf16=False):
    assert z_i.shape == z_i_prime.shape and z_i.ndim == 2
    B, D = z_i.shape

    if cast_inputs_to_bf16 and z_i.dtype != jnp.bfloat16:
        # Halves the kernel's HBM reads; a real win when the cast fuses into the
        # producer of z_i / z_i' inside a jitted step.  Accumulation stays f32.
        z_i = z_i.astype(jnp.bfloat16)
        z_i_prime = z_i_prime.astype(jnp.bfloat16)

    itemsize = jnp.dtype(z_i.dtype).itemsize
    vmem_limit = _vmem_limit_bytes()

    # TODO(synk): for D < 128 the (tb, D) tiles are lane-sparse on the load path and
    # VPU; packing multiple rows into the lane dim (segmented reduce) would recover
    # ~128/D of bandwidth but is not implemented here.
    if block_rows is not None:
        tb = min(int(block_rows), B)
    else:
        tb = _pick_block_rows(B, D, itemsize, vmem_limit)

    if B <= tb:
        tb = B                                    # single full-extent block
    else:
        sub = 8 if itemsize >= 4 else 16          # sublane-aligned tiles for the dtype
        tb = max(sub, tb - tb % sub)
    num_tiles = pl.cdiv(B, tb)

    kernel = functools.partial(
        _partial_sums_kernel,
        inv_temperature=float(1.0 / temperature),
        batch_size=B)

    partials = pl.pallas_call(
        kernel,
        out_shape=jax.ShapeDtypeStruct((num_tiles, 1, 128), jnp.float32),
        grid_spec=pltpu.PrefetchScalarGridSpec(
            num_scalar_prefetch=0,
            grid=(num_tiles,),
            in_specs=[
                pl.BlockSpec((tb, D), lambda i: (i, 0)),
                pl.BlockSpec((tb, D), lambda i: (i, 0)),
            ],
            out_specs=pl.BlockSpec((1, 1, 128), lambda i: (i, 0, 0)),
        ),
        compiler_params=pltpu.CompilerParams(
            dimension_semantics=("parallel",),
            vmem_limit_bytes=int(vmem_limit)),
        cost_estimate=pl.CostEstimate(
            flops=3 * B * D,
            transcendentals=B,
            bytes_accessed=2 * B * D * itemsize + num_tiles * 128 * 4),
    )(z_i, z_i_prime)

    sum_exp = jnp.sum(partials[:, 0, 0])
    sum_scores = jnp.sum(partials[:, 0, 1])
    bad_count = jnp.sum(partials[:, 0, 2])

    b = jnp.float32(B)
    # (B-1) off-diagonal entries per column, each log(total) - scores[c]; diag is 0.
    loss = (b - 1.0) * (b * jnp.log(sum_exp) - sum_scores) / (b * b)
    # torch parity: any zero / non-finite exp(score) turns the whole mean into NaN.
    return jnp.where(bad_count > 0, jnp.float32(jnp.nan), loss)


def _reference(z_i, z_i_prime, temperature):
    """Literal pure-JAX transcription of the torch forward (builds the BxB matrix)."""
    scores = jnp.einsum('bi,bi->b', z_i, z_i_prime) / temperature
    exp_pos = jnp.exp(scores)
    exp_neg = jnp.sum(exp_pos, axis=-1, keepdims=True) - exp_pos
    B = scores.shape[0]
    mask = jnp.eye(B, dtype=bool)
    neg_mat = jnp.where(mask, 0.0, jnp.broadcast_to(exp_neg[None, :], (B, B)))
    loss = -jnp.log(exp_pos[None, :] / (exp_pos[None, :] + neg_mat))
    return jnp.mean(loss)


if __name__ == "__main__":
    key = jax.random.PRNGKey(0)

    # Case 1: small batch, single tile, column (unaligned) epilogue path.
    B, D, T = 8, 32, 0.5
    k1, k2 = jax.random.split(key)
    z_i = jax.random.normal(k1, (B, D), dtype=jnp.float32)
    z_p = jax.random.normal(k2, (B, D), dtype=jnp.float32)
    loss = jax.block_until_ready(global_ss_contrastive_loss(z_i, z_p, T))
    ref = jax.block_until_ready(_reference(z_i, z_p, T))
    assert jnp.allclose(loss, ref, rtol=1e-4, atol=1e-5), (loss, ref)

    # Case 2: multi-tile grid with a partial last tile, column epilogue path.
    B2, D2, T2 = 24, 128, 2.0
    k3, k4 = jax.random.split(k2)
    z_i2 = jax.random.normal(k3, (B2, D2), dtype=jnp.float32)
    z_p2 = jax.random.normal(k4, (B2, D2), dtype=jnp.float32)
    loss2 = jax.block_until_ready(
        global_ss_contrastive_loss(z_i2, z_p2, T2, block_rows=16))
    ref2 = jax.block_until_ready(_reference(z_i2, z_p2, T2))
    assert jnp.allclose(loss2, ref2, rtol=1e-4, atol=1e-5), (loss2, ref2)

    # Case 3: auto tile picker (>=4 tiles), lane-dense epilogue, partial last tile.
    B3, D3, T3 = 600, 128, 2.0
    k5, k6 = jax.random.split(k4)
    z_i3 = jax.random.normal(k5, (B3, D3), dtype=jnp.float32)
    z_p3 = jax.random.normal(k6, (B3, D3), dtype=jnp.float32)
    loss3 = jax.block_until_ready(global_ss_contrastive_loss(z_i3, z_p3, T3))
    ref3 = jax.block_until_ready(_reference(z_i3, z_p3, T3))
    assert jnp.allclose(loss3, ref3, rtol=1e-4, atol=1e-5), (loss3, ref3)

    # Case 4: bf16 input cast flag + lane-dense multi-tile path.
    B4, D4, T4 = 512, 128, 4.0
    k7, k8 = jax.random.split(k6)
    z_i4 = jax.random.normal(k7, (B4, D4), dtype=jnp.float32)
    z_p4 = jax.random.normal(k8, (B4, D4), dtype=jnp.float32)
    loss4 = jax.block_until_ready(
        global_ss_contrastive_loss(z_i4, z_p4, T4, block_rows=256,
                                   cast_inputs_to_bf16=True))
    ref4 = jax.block_until_ready(_reference(z_i4, z_p4, T4))
    assert jnp.allclose(loss4, ref4, rtol=2e-2, atol=1e-3), (loss4, ref4)

    print("KERNEL_OK")
</pallas_src>

<mosaic_0001>
module attributes {stable_mosaic.version = 11 : i64} {
  func.func @_partial_sums_kernel(%arg0: i32, %arg1: memref<8x32xf32, #tpu.memory_space<vmem>>, %arg2: memref<8x32xf32, #tpu.memory_space<vmem>>, %arg3: memref<1x1x128xf32, #tpu.memory_space<vmem>>) attributes {dimension_semantics = [#tpu.dimension_semantics<parallel>], iteration_bounds = array<i64: 1>, scalar_prefetch = 0 : i64, scratch_operands = 0 : i64, tpu.core_type = #tpu.core_type<tc>, window_params = [{transform_indices = @transform_0, window_bounds = array<i64: 8, 32>}, {transform_indices = @transform_1, window_bounds = array<i64: 8, 32>}, {transform_indices = @transform_2, window_bounds = array<i64: 1, 1, 128>}]} {
    %c0 = arith.constant 0 : index
    %c0_0 = arith.constant 0 : index
    %0 = vector.load %arg1[%c0, %c0_0] : memref<8x32xf32, #tpu.memory_space<vmem>>, vector<8x32xf32>
    %c0_1 = arith.constant 0 : index
    %c0_2 = arith.constant 0 : index
    %1 = vector.load %arg2[%c0_1, %c0_2] : memref<8x32xf32, #tpu.memory_space<vmem>>, vector<8x32xf32>
    %2 = arith.mulf %0, %1 : vector<8x32xf32>
    %cst = arith.constant dense<0.000000e+00> : vector<8xf32>
    %3 = vector.multi_reduction <add>, %2, %cst [1] : vector<8x32xf32> to vector<8xf32>
    %4 = vector.shape_cast %3 : vector<8xf32> to vector<8x1xf32>
    %cst_3 = arith.constant 2.000000e+00 : f32
    %5 = vector.broadcast %cst_3 : f32 to vector<8x1xf32>
    %6 = arith.mulf %4, %5 : vector<8x1xf32>
    %7 = math.exp %6 : vector<8x1xf32>
    %c8_i32 = arith.constant 8 : i32
    %8 = arith.muli %arg0, %c8_i32 : i32
    %9 = tpu.iota {dimensions = array<i32: 0>} : vector<8x1xi32>
    %c1_i32 = arith.constant 1 : i32
    %10 = vector.broadcast %c1_i32 : i32 to vector<8x1xi32>
    %11 = arith.muli %9, %10 : vector<8x1xi32>
    %12 = vector.broadcast %8 : i32 to vector<8x1xi32>
    %13 = arith.addi %12, %11 : vector<8x1xi32>
    %14 = tpu.iota {dimensions = array<i32: 1>} : vector<8x1xi32>
    %15 = arith.addi %13, %14 : vector<8x1xi32>
    %c8_i32_4 = arith.constant 8 : i32
    %16 = vector.broadcast %c8_i32_4 : i32 to vector<8x1xi32>
    %17 = arith.cmpi slt, %15, %16 : vector<8x1xi32>
    %cst_5 = arith.constant 0.000000e+00 : f32
    %18 = vector.broadcast %cst_5 : f32 to vector<8x1xf32>
    %19 = arith.select %17, %7, %18 : vector<8x1xi1>, vector<8x1xf32>
    %20 = vector.shape_cast %19 : vector<8x1xf32> to vector<1x8x1xf32>
    %cst_6 = arith.constant dense<0.000000e+00> : vector<1xf32>
    %21 = vector.multi_reduction <add>, %20, %cst_6 [1, 2] : vector<1x8x1xf32> to vector<1xf32>
    %22 = vector.shape_cast %21 : vector<1xf32> to vector<1x1x1xf32>
    %23 = vector.extract %22[0, 0, 0] : f32 from vector<1x1x1xf32>
    %24 = arith.select %17, %6, %18 : vector<8x1xi1>, vector<8x1xf32>
    %25 = vector.shape_cast %24 : vector<8x1xf32> to vector<1x8x1xf32>
    %cst_7 = arith.constant dense<0.000000e+00> : vector<1xf32>
    %26 = vector.multi_reduction <add>, %25, %cst_7 [1, 2] : vector<1x8x1xf32> to vector<1xf32>
    %27 = vector.shape_cast %26 : vector<1xf32> to vector<1x1x1xf32>
    %28 = vector.extract %27[0, 0, 0] : f32 from vector<1x1x1xf32>
    %cst_8 = arith.constant 0.000000e+00 : f32
    %29 = vector.broadcast %cst_8 : f32 to vector<8x1xf32>
    %30 = arith.cmpf oeq, %7, %29 : vector<8x1xf32>
    %31 = tpu.weird %7 : vector<8x1xf32> -> vector<8x1xi1>
    %cst_9 = arith.constant dense<true> : vector<8x1xi1>
    %32 = arith.xori %31, %cst_9 : vector<8x1xi1>
    %cst_10 = arith.constant dense<true> : vector<8x1xi1>
    %33 = arith.xori %32, %cst_10 : vector<8x1xi1>
    %34 = arith.ori %30, %33 : vector<8x1xi1>
    %35 = arith.andi %17, %34 : vector<8x1xi1>
    %cst_11 = arith.constant 1.000000e+00 : f32
    %cst_12 = arith.constant 0.000000e+00 : f32
    %36 = vector.broadcast %cst_11 : f32 to vector<8x1xf32>
    %37 = vector.broadcast %cst_12 : f32 to vector<8x1xf32>
    %38 = arith.select %35, %36, %37 : vector<8x1xi1>, vector<8x1xf32>
    %39 = vector.shape_cast %38 : vector<8x1xf32> to vector<1x8x1xf32>
    %cst_13 = arith.constant dense<0.000000e+00> : vector<1xf32>
    %40 = vector.multi_reduction <add>, %39, %cst_13 [1, 2] : vector<1x8x1xf32> to vector<1xf32>
    %41 = vector.shape_cast %40 : vector<1xf32> to vector<1x1x1xf32>
    %42 = vector.extract %41[0, 0, 0] : f32 from vector<1x1x1xf32>
    %43 = tpu.iota {dimensions = array<i32: 2>} : vector<1x1x128xi32>
    %c0_i32 = arith.constant 0 : i32
    %44 = vector.broadcast %c0_i32 : i32 to vector<1x1x128xi32>
    %45 = arith.cmpi eq, %43, %44 : vector<1x1x128xi32>
    %c1_i32_14 = arith.constant 1 : i32
    %46 = vector.broadcast %c1_i32_14 : i32 to vector<1x1x128xi32>
    %47 = arith.cmpi eq, %43, %46 : vector<1x1x128xi32>
    %c2_i32 = arith.constant 2 : i32
    %48 = vector.broadcast %c2_i32 : i32 to vector<1x1x128xi32>
    %49 = arith.cmpi eq, %43, %48 : vector<1x1x128xi32>
    %cst_15 = arith.constant 0.000000e+00 : f32
    %50 = vector.broadcast %42 : f32 to vector<1x1x128xf32>
    %51 = vector.broadcast %cst_15 : f32 to vector<1x1x128xf32>
    %52 = arith.select %49, %50, %51 : vector<1x1x128xi1>, vector<1x1x128xf32>
    %53 = vector.broadcast %28 : f32 to vector<1x1x128xf32>
    %54 = arith.select %47, %53, %52 : vector<1x1x128xi1>, vector<1x1x128xf32>
    %55 = vector.broadcast %23 : f32 to vector<1x1x128xf32>
    %56 = arith.select %45, %55, %54 : vector<1x1x128xi1>, vector<1x1x128xf32>
    %c0_16 = arith.constant 0 : index
    %c0_17 = arith.constant 0 : index
    %c0_18 = arith.constant 0 : index
    %57 = vector.load %arg3[%c0_16, %c0_17, %c0_18] : memref<1x1x128xf32, #tpu.memory_space<vmem>>, vector<1x1x128xf32>
    tpu.vector_store %arg3[%c0_16, %c0_17, %c0_18], %56 {strides = array<i32>} : memref<1x1x128xf32, #tpu.memory_space<vmem>>, vector<1x1x128xf32>,
    return
  }
  func.func @transform_0(%arg0: i32) -> (i32, i32) {
    %c0_i32 = arith.constant 0 : i32
    %c0_i32_0 = arith.constant 0 : i32
    return %arg0, %c0_i32 : i32, i32
  }
  func.func @transform_1(%arg0: i32) -> (i32, i32) {
    %c0_i32 = arith.constant 0 : i32
    %c0_i32_0 = arith.constant 0 : i32
    return %arg0, %c0_i32 : i32, i32
  }
  func.func @transform_2(%arg0: i32) -> (i32, i32, i32) {
    %c0_i32 = arith.constant 0 : i32
    %c0_i32_0 = arith.constant 0 : i32
    %c0_i32_1 = arith.constant 0 : i32
    return %arg0, %c0_i32, %c0_i32_0 : i32, i32, i32
  }
}

</mosaic_0001>

<llo_original>
// kernel: tpu_custom_call.1
$region0: #{tpu_custom_call.1}
  #allocation0 [shape = 'u32[]', space=smem, size = 0x4, offset = 0x4, fixed_abs, tag = 'smem constant byte address 0x4 - core index']
  #allocation1 [shape = 'u32[144,128]{1,0:T(1,128)}', space=vmem, size = 0x12000, scoped, tag = 'internal scratch']
  %s0 = inlined_call_operand.hbm [shape: f32[8,32], index: 0, kind: input, shape index: {}]
  %s1 = inlined_call_operand.hbm [shape: f32[8,32], index: 1, kind: input, shape index: {}]
  %s2 = inlined_call_operand.hbm [shape: f32[1,1,128], index: 2, kind: output, shape index: {}]
  %s3 = sld [smem:[#allocation0]]
  $region26: #{tpu_custom_call.1} parent=0
    _
  %s5 = ssub.s32 1, %s3
  %s6 = scalar_select 0, %s5, %s3
  $region1: #{tpu_custom_call.1} parent=0
    #allocation2 [shape = 'u8[4096]{0}', space=vmem, size = 0x1000, scoped, tag = 'input window, operand 0, single buffered']
    #allocation3 [shape = 's32[1]{0}', space=sflag, size = 0x4, scoped, tag = 'scoped memory for tpu_custom_call.1']
    #allocation4 [shape = 's32[1]{0}', space=sflag, size = 0x4, scoped, tag = 'scoped memory for tpu_custom_call.1']
    #allocation5 [shape = 'u8[4096]{0}', space=vmem, size = 0x1000, scoped, tag = 'input window, operand 1, single buffered']
    #allocation6 [shape = 's32[1]{0}', space=sflag, size = 0x4, scoped, tag = 'scoped memory for tpu_custom_call.1']
    #allocation7 [shape = 'u8[512]{0}', space=vmem, size = 0x400, scoped, tag = 'output window, operand 0, single buffered']
    %7 = vsyncpa [#allocation3], 0
    %8 = vsyncpa [#allocation6], 0
    %9 = vsyncpa [#allocation4], 0
    // Predicated region
    $region2: #{tpu_custom_call.1} parent=1 // pred_check
      _
    $region3: #{tpu_custom_call.1} parent=1 // pred_check_branch
      %11 = sbr.rel (0) target = $region5
    $region4: #{tpu_custom_call.1} parent=1 // pred_region
      %s13 = ssub.s32 128, 128
      %14 = vsyncadd [#allocation3], %s13
      %s16 = sshll.u32 [#allocation2], 4
      %s17 = int_to_ptr.vmem [resolvable:$true] %s16
      %19 = dma.hbm_to_vmem [thread:$0]  %s0, 128, %s17, [#allocation3]
    $region5: #{tpu_custom_call.1} parent=1 // pred_fallthru
      _
    // Predicated region
    $region6: #{tpu_custom_call.1} parent=1 // pred_check
      _
    $region7: #{tpu_custom_call.1} parent=1 // pred_check_branch
      %21 = sbr.rel (0) target = $region9
    $region8: #{tpu_custom_call.1} parent=1 // pred_region
      %s23 = ssub.s32 128, 128
      %24 = vsyncadd [#allocation6], %s23
      %s26 = sshll.u32 [#allocation5], 4
      %s27 = int_to_ptr.vmem [resolvable:$true] %s26
      %29 = dma.hbm_to_vmem [thread:$0]  %s1, 128, %s27, [#allocation6]
    $region9: #{tpu_custom_call.1} parent=1 // pred_fallthru
      _
    // Predicated region
    $region10: #{tpu_custom_call.1} parent=1 // pred_check
      _
    $region11: #{tpu_custom_call.1} parent=1 // pred_check_branch
      %31 = sbr.rel (0) target = $region13
    $region12: #{tpu_custom_call.1} parent=1 // pred_region
      %32 = dma.done [#allocation3], 128
    $region13: #{tpu_custom_call.1} parent=1 // pred_fallthru
      _
    // Predicated region
    $region14: #{tpu_custom_call.1} parent=1 // pred_check
      _
    $region15: #{tpu_custom_call.1} parent=1 // pred_check_branch
      %34 = sbr.rel (0) target = $region17
    $region16: #{tpu_custom_call.1} parent=1 // pred_region
      %35 = dma.done [#allocation6], 128
    $region17: #{tpu_custom_call.1} parent=1 // pred_fallthru
      _
    %v36 = vld [vmem:[#allocation2] sm:$0xff]
    %v37 = vld [vmem:[#allocation5] sm:$0xff]
    %v38 = vmul.f32 %v36, %v37
    %vm39 = vcmask 261120
    %v40 = vsel %vm39, %v38, 0.0
    %41 = vadd.xlane.f32.xlu0 %v40
    %v42 = vpop.xlane.xlu0 %41
    %v43 = vmul.f32 %v42, 2.0
    %v44 = vmul.f32 %v43, 1.442695
    %v45 = vpow.pop %v44
    %s46 = smul.u32 0, 8
    %v47 = vlaneseq
    %v48 = vshrl.u32 %v47, 7
    %v49 = vstv %s46
    %v50 = vadd.s32 %v49, %v48
    %v51 = vlaneseq
    %v52 = vand.u32 %v51, 127
    %v53 = vadd.s32 %v50, %v52
    %vm54 = vcmp.lt.s32.totalorder %v53, 8
    %v55 = vsel %vm54, %v45, 0.0
    %vm56 = vcmask 7168
    %v57 = vsel %vm56, %v55, 0.0
    %58 = vadd.xlane.f32.xlu0 %v57
    %v59 = vpop.xlane.xlu0 %58
    %v60 = vrot.slane %v59, 4
    %v61 = vadd.f32 %v59, %v60
    %v62 = vrot.slane %v61, 2
    %v63 = vadd.f32 %v61, %v62
    %v64 = vrot.slane %v63, 1
    %v65 = vadd.f32 %v63, %v64
    %s66 = vtos %v65
    %v67 = vsel %vm54, %v43, 0.0
    %v68 = vsel %vm56, %v67, 0.0
    %69 = vadd.xlane.f32.xlu0 %v68
    %v70 = vpop.xlane.xlu0 %69
    %v71 = vrot.slane %v70, 4
    %v72 = vadd.f32 %v70, %v71
    %v73 = vrot.slane %v72, 2
    %v74 = vadd.f32 %v72, %v73
    %v75 = vrot.slane %v74, 1
    %v76 = vadd.f32 %v74, %v75
    %s77 = vtos %v76
    %vm78 = vcmp.eq.f32.partialorder %v45, 0.0
    %vm79 = vweird.f32 %v45
    %vm80 = vmor %vm78, %vm79
    %vm81 = vmand %vm54, %vm80
    %v82 = vsel %vm81, 1.0, 0.0
    %v83 = vsel %vm56, %v82, 0.0
    %84 = vadd.xlane.f32.xlu0 %v83
    %v85 = vpop.xlane.xlu0 %84
    %v86 = vrot.slane %v85, 4
    %v87 = vadd.f32 %v85, %v86
    %v88 = vrot.slane %v87, 2
    %v89 = vadd.f32 %v87, %v88
    %v90 = vrot.slane %v89, 1
    %v91 = vadd.f32 %v89, %v90
    %s92 = vtos %v91
    %vm93 = vcmp.eq.s32.totalorder %v52, 0
    %vm94 = vcmp.eq.s32.totalorder %v52, 1
    %vm95 = vcmp.eq.s32.totalorder %v52, 2
    %v96 = vstv %s92
    %v97 = vsel %vm95, %v96, 0.0
    %v98 = vstv %s77
    %v99 = vsel %vm94, %v98, %v97
    %v100 = vstv %s66
    %v101 = vsel %vm93, %v100, %v99
    %102 = vst [vmem:[#allocation7] sm:$0x1] %v101
    // Predicated region
    $region18: #{tpu_custom_call.1} parent=1 // pred_check
      _
    $region19: #{tpu_custom_call.1} parent=1 // pred_check_branch
      %104 = sbr.rel (0) target = $region21
    $region20: #{tpu_custom_call.1} parent=1 // pred_region
      %s106 = ssub.s32 16, 16
      %107 = vsyncadd [#allocation4], %s106
      %s109 = sshll.u32 [#allocation7], 4
      %s110 = int_to_ptr.vmem [resolvable:$true] %s109
      %112 = dma.vmem_to_hbm [thread:$0]  %s110, 16, %s2, [#allocation4]
    $region21: #{tpu_custom_call.1} parent=1 // pred_fallthru
      _
    // Predicated region
    $region22: #{tpu_custom_call.1} parent=1 // pred_check
      _
    $region23: #{tpu_custom_call.1} parent=1 // pred_check_branch
      %114 = sbr.rel (0) target = $region25
    $region24: #{tpu_custom_call.1} parent=1 // pred_region
      %115 = dma.done [#allocation4], 16
    $region25: #{tpu_custom_call.1} parent=1 // pred_fallthru
      _
    %116 = vsyncpa [#allocation3], 1
    %117 = vsyncpa [#allocation6], 1
    %118 = vsyncpa [#allocation4], 1

</llo_original>
